<compile_context>
chip_gen: v6e
topology: v6e:2x2x1
jax: 0.10.0
libtpu: 0.0.40
codegen_flags: <defaults>
</compile_context>

<pallas_src>
import functools

import jax
import jax.numpy as jnp
from jax.experimental import pallas as pl
from jax.experimental.pallas import tpu as pltpu


def _cdiv(a, b):
    return -(-a // b)


def _round_up(a, m):
    return _cdiv(a, m) * m


def _decoder_block_kernel(x_ref, w1_ref, b1_ref, w2_ref, b2_ref, o_ref):
    """One row tile of the packed, BN-folded decoder block.

    x_ref:  (TM, p*2H)    packed input rows (p samples per packed row)
    w1_ref: (p*2H, p*H)   block-diagonal, BN1-scale folded
    b1_ref: (1,    p*H)   BN1 shift, tiled p times
    w2_ref: (p*H,  p*O)   block-diagonal, BN2-scale folded
    b2_ref: (1,    p*O)   BN2 shift, tiled p times
    o_ref:  (TM,   p*O)
    """
    # Linear(2H -> H) + folded BN1 scale (in weights) + shift + ReLU.
    h = jnp.dot(x_ref[...], w1_ref[...], preferred_element_type=jnp.float32)
    h = jnp.maximum(h + b1_ref[...], 0.0)

    # Linear(H -> O) + folded BN2 scale (in weights) + shift + ReLU.
    # Cast the activation to the weight dtype for the MXU (no-op in f32).
    y = jnp.dot(h.astype(w2_ref.dtype), w2_ref[...],
                preferred_element_type=jnp.float32)
    y = jnp.maximum(y + b2_ref[...], 0.0)
    o_ref[...] = y.astype(o_ref.dtype)


def decoder_block_forward(x, params, *, row_tile=1024, pack=None,
                          input_dtype=jnp.float32):
    """Run the _DecoderBlock forward pass.

    x: (..., n_frames, n_feats) with n_feats == 2 * num_hidden
    params: dict with w1 (H, 2H), w2 (O, H) and BN params for both layers.
    row_tile: tile size in *packed* rows (each packed row holds `pack` samples).
    pack: samples packed into the lane dim (auto: largest p with p*2H <= 256).
    input_dtype: dtype for x and the weights on the HBM side (f32 or bf16);
                 accumulation and the shift/ReLU epilogue are always f32.
    Returns: (-1, n_frames, num_outputs) float32
    """
    n_frames = x.shape[-2]
    n_feats = x.shape[-1]
    num_hidden = params["w1"].shape[0]
    num_outputs = params["w2"].shape[0]
    assert n_feats == 2 * num_hidden, (n_feats, num_hidden)

    eps = 1e-5
    # Fold BatchNorm1d (inference mode) into per-channel scale/shift.
    s1 = params["bn1_gamma"] / jnp.sqrt(params["bn1_var"] + eps)
    b1 = params["bn1_beta"] - params["bn1_mean"] * s1
    s2 = params["bn2_gamma"] / jnp.sqrt(params["bn2_var"] + eps)
    b2 = params["bn2_beta"] - params["bn2_mean"] * s2

    # Fold the BN scales into the transposed linear weights (trace-time, free).
    w1_f = params["w1"].T.astype(jnp.float32) * s1[None, :]     # (2H, H)
    w2_f = params["w2"].T.astype(jnp.float32) * s2[None, :]     # (H, O)

    # Row-packing factor: p consecutive samples share one packed row so that
    # the feature/lane dims become (close to) MXU/vreg friendly widths.
    if pack is None:
        pack = max(1, min(8, 256 // n_feats))
    p = pack

    # Block-diagonal weights (kron(I_p, W)) and p-tiled shifts.
    eye_p = jnp.eye(p, dtype=jnp.float32)
    w1_bd = jnp.kron(eye_p, w1_f).astype(input_dtype)            # (p*2H, p*H)
    w2_bd = jnp.kron(eye_p, w2_f).astype(input_dtype)            # (p*H,  p*O)
    b1_t = jnp.tile(b1, p).reshape(1, p * num_hidden).astype(jnp.float32)
    b2_t = jnp.tile(b2, p).reshape(1, p * num_outputs).astype(jnp.float32)

    x2d = x.reshape(-1, n_feats).astype(input_dtype)
    n_rows = x2d.shape[0]

    # Choose the packed-row tile: as large as requested, but keep a handful of
    # grid steps for small inputs (helps v7x's two TensorCores) and keep the
    # sublane dim a multiple of 8.
    np_rows = _cdiv(n_rows, p)                       # packed rows needed
    tile = min(row_tile, max(8, _round_up(_cdiv(np_rows, 4), 8)))
    np_pad = _round_up(max(np_rows, 1), tile)        # padded packed rows
    n_rows_pad = np_pad * p

    if n_rows_pad != n_rows:
        x2d = jnp.pad(x2d, ((0, n_rows_pad - n_rows), (0, 0)))
    xp = x2d.reshape(np_pad, p * n_feats)            # free contiguous reshape

    grid = (np_pad // tile,)
    rep = lambda i: (0, 0)   # weights / shifts resident across all grid steps

    out_p = pl.pallas_call(
        _decoder_block_kernel,
        out_shape=jax.ShapeDtypeStruct((np_pad, p * num_outputs), jnp.float32),
        grid=grid,
        in_specs=[
            pl.BlockSpec((tile, p * n_feats), lambda i: (i, 0)),      # x tile
            pl.BlockSpec((p * n_feats, p * num_hidden), rep),         # W1 (bd)
            pl.BlockSpec((1, p * num_hidden), rep),                   # shift1
            pl.BlockSpec((p * num_hidden, p * num_outputs), rep),     # W2 (bd)
            pl.BlockSpec((1, p * num_outputs), rep),                  # shift2
        ],
        out_specs=pl.BlockSpec((tile, p * num_outputs), lambda i: (i, 0)),
        compiler_params=pltpu.CompilerParams(
            dimension_semantics=("parallel",)),
    )(xp, w1_bd, b1_t, w2_bd, b2_t)

    out2d = out_p.reshape(n_rows_pad, num_outputs)[:n_rows]
    return out2d.reshape(-1, n_frames, num_outputs)


def init_params(key, num_outputs, num_hidden):
    """Deterministic parameter init matching the module's shapes."""
    k1, k2, k3, k4 = jax.random.split(key, 4)
    first_in = 2 * num_hidden
    return {
        # torch.nn.Linear weight shape: (out_features, in_features)
        "w1": jax.random.normal(k1, (num_hidden, first_in), jnp.float32) * 0.1,
        "w2": jax.random.normal(k2, (num_outputs, num_hidden), jnp.float32) * 0.1,
        # BatchNorm1d(num_hidden)
        "bn1_gamma": 1.0 + 0.05 * jax.random.normal(k3, (num_hidden,), jnp.float32),
        "bn1_beta": jnp.linspace(-0.1, 0.1, num_hidden, dtype=jnp.float32),
        "bn1_mean": jnp.zeros((num_hidden,), jnp.float32),
        "bn1_var": jnp.ones((num_hidden,), jnp.float32),
        # BatchNorm1d(num_outputs)
        "bn2_gamma": 1.0 + 0.05 * jax.random.normal(k4, (num_outputs,), jnp.float32),
        "bn2_beta": jnp.linspace(-0.1, 0.1, num_outputs, dtype=jnp.float32),
        "bn2_mean": jnp.zeros((num_outputs,), jnp.float32),
        "bn2_var": jnp.ones((num_outputs,), jnp.float32),
    }


def _reference_forward(x, params):
    """Pure-JAX reference (unfused module math) for sanity checking."""
    eps = 1e-5
    n_frames = x.shape[-2]
    x2d = x.reshape(-1, x.shape[-1])
    h = x2d @ params["w1"].T
    s1 = params["bn1_gamma"] / jnp.sqrt(params["bn1_var"] + eps)
    h = jnp.maximum((h - params["bn1_mean"]) * s1 + params["bn1_beta"], 0.0)
    y = h @ params["w2"].T
    s2 = params["bn2_gamma"] / jnp.sqrt(params["bn2_var"] + eps)
    y = jnp.maximum((y - params["bn2_mean"]) * s2 + params["bn2_beta"], 0.0)
    return y.reshape(-1, n_frames, y.shape[-1])


if __name__ == "__main__":
    num_hidden = 32
    num_outputs = 4

    key = jax.random.PRNGKey(0)
    kx, kp, kx2 = jax.random.split(key, 3)
    params = init_params(kp, num_outputs, num_hidden)

    # --- Test 1: small shape, f32 path --------------------------------------
    batch, n_frames = 2, 8
    x = jax.random.normal(kx, (batch, n_frames, 2 * num_hidden), jnp.float32)

    fwd_f32 = jax.jit(decoder_block_forward)
    out = jax.block_until_ready(fwd_f32(x, params))
    ref = _reference_forward(x, params)
    assert out.shape == (batch, n_frames, num_outputs), out.shape
    assert jnp.allclose(out, ref, atol=1e-4, rtol=1e-4), (
        "f32 mismatch, max err %e" % float(jnp.max(jnp.abs(out - ref))))

    # --- Test 2: ragged row count (exercises padding + multi-step grid) -----
    batch2, n_frames2 = 3, 50
    x2 = jax.random.normal(kx2, (batch2, n_frames2, 2 * num_hidden), jnp.float32)
    out2 = jax.block_until_ready(fwd_f32(x2, params))
    ref2 = _reference_forward(x2, params)
    assert out2.shape == (batch2, n_frames2, num_outputs), out2.shape
    assert jnp.allclose(out2, ref2, atol=1e-4, rtol=1e-4), (
        "padded f32 mismatch, max err %e" % float(jnp.max(jnp.abs(out2 - ref2))))

    # --- Test 3: bf16 HBM-side inputs/weights (f32 accumulate + epilogue) ---
    fwd_bf16 = jax.jit(functools.partial(decoder_block_forward,
                                         input_dtype=jnp.bfloat16))
    out_bf16 = jax.block_until_ready(fwd_bf16(x, params))
    assert out_bf16.shape == (batch, n_frames, num_outputs)
    assert jnp.allclose(out_bf16, ref, atol=1e-1, rtol=1e-1), (
        "bf16 mismatch, max err %e" % float(jnp.max(jnp.abs(out_bf16 - ref))))

    print("KERNEL_OK")
</pallas_src>

<mosaic_0001>
module attributes {stable_mosaic.version = 11 : i64} {
  func.func @_decoder_block_kernel(%arg0: i32, %arg1: memref<8x256xf32, #tpu.memory_space<vmem>>, %arg2: memref<256x128xf32, #tpu.memory_space<vmem>>, %arg3: memref<1x128xf32, #tpu.memory_space<vmem>>, %arg4: memref<128x16xf32, #tpu.memory_space<vmem>>, %arg5: memref<1x16xf32, #tpu.memory_space<vmem>>, %arg6: memref<8x16xf32, #tpu.memory_space<vmem>>) attributes {dimension_semantics = [#tpu.dimension_semantics<parallel>], iteration_bounds = array<i64: 1>, scalar_prefetch = 0 : i64, scratch_operands = 0 : i64, tpu.core_type = #tpu.core_type<tc>, window_params = [{transform_indices = @transform_0, window_bounds = array<i64: 8, 256>}, {pipeline_mode = #tpu.pipeline_mode<synchronous>, transform_indices = @transform_1, window_bounds = array<i64: 256, 128>}, {pipeline_mode = #tpu.pipeline_mode<synchronous>, transform_indices = @transform_2, window_bounds = array<i64: 1, 128>}, {pipeline_mode = #tpu.pipeline_mode<synchronous>, transform_indices = @transform_3, window_bounds = array<i64: 128, 16>}, {pipeline_mode = #tpu.pipeline_mode<synchronous>, transform_indices = @transform_4, window_bounds = array<i64: 1, 16>}, {transform_indices = @transform_5, window_bounds = array<i64: 8, 16>}]} {
    %c0 = arith.constant 0 : index
    %c0_0 = arith.constant 0 : index
    %0 = vector.load %arg1[%c0, %c0_0] : memref<8x256xf32, #tpu.memory_space<vmem>>, vector<8x256xf32>
    %c0_1 = arith.constant 0 : index
    %c0_2 = arith.constant 0 : index
    %1 = vector.load %arg2[%c0_1, %c0_2] : memref<256x128xf32, #tpu.memory_space<vmem>>, vector<256x128xf32>
    %cst = arith.constant dense<0.000000e+00> : vector<8x128xf32>
    %2 = tpu.matmul %0, %1, %cst {dimension_numbers = #tpu.dot_dimension_numbers<[1], [0], [0], [1], [0, 0, 1, 1], [], []>} : vector<8x256xf32>, vector<256x128xf32>, vector<8x128xf32> -> vector<8x128xf32>
    %c0_3 = arith.constant 0 : index
    %c0_4 = arith.constant 0 : index
    %3 = vector.load %arg3[%c0_3, %c0_4] : memref<1x128xf32, #tpu.memory_space<vmem>>, vector<1x128xf32>
    %4 = vector.broadcast %3 : vector<1x128xf32> to vector<8x128xf32>
    %5 = arith.addf %2, %4 : vector<8x128xf32>
    %cst_5 = arith.constant 0.000000e+00 : f32
    %6 = vector.broadcast %cst_5 : f32 to vector<8x128xf32>
    %7 = arith.maximumf %5, %6 : vector<8x128xf32>
    %c0_6 = arith.constant 0 : index
    %c0_7 = arith.constant 0 : index
    %8 = vector.load %arg4[%c0_6, %c0_7] : memref<128x16xf32, #tpu.memory_space<vmem>>, vector<128x16xf32>
    %cst_8 = arith.constant dense<0.000000e+00> : vector<8x16xf32>
    %9 = tpu.matmul %7, %8, %cst_8 {dimension_numbers = #tpu.dot_dimension_numbers<[1], [0], [0], [1], [0, 0, 1, 1], [], []>} : vector<8x128xf32>, vector<128x16xf32>, vector<8x16xf32> -> vector<8x16xf32>
    %c0_9 = arith.constant 0 : index
    %c0_10 = arith.constant 0 : index
    %10 = vector.load %arg5[%c0_9, %c0_10] : memref<1x16xf32, #tpu.memory_space<vmem>>, vector<1x16xf32>
    %11 = vector.broadcast %10 : vector<1x16xf32> to vector<8x16xf32>
    %12 = arith.addf %9, %11 : vector<8x16xf32>
    %cst_11 = arith.constant 0.000000e+00 : f32
    %13 = vector.broadcast %cst_11 : f32 to vector<8x16xf32>
    %14 = arith.maximumf %12, %13 : vector<8x16xf32>
    %c0_12 = arith.constant 0 : index
    %c0_13 = arith.constant 0 : index
    %15 = vector.load %arg6[%c0_12, %c0_13] : memref<8x16xf32, #tpu.memory_space<vmem>>, vector<8x16xf32>
    tpu.vector_store %arg6[%c0_12, %c0_13], %14 {strides = array<i32>} : memref<8x16xf32, #tpu.memory_space<vmem>>, vector<8x16xf32>,
    return
  }
  func.func @transform_0(%arg0: i32) -> (i32, i32) {
    %c0_i32 = arith.constant 0 : i32
    %c0_i32_0 = arith.constant 0 : i32
    return %arg0, %c0_i32 : i32, i32
  }
  func.func @transform_1(%arg0: i32) -> (i32, i32) {
    %c0_i32 = arith.constant 0 : i32
    %c0_i32_0 = arith.constant 0 : i32
    %c0_i32_1 = arith.constant 0 : i32
    return %c0_i32, %c0_i32_0 : i32, i32
  }
  func.func @transform_2(%arg0: i32) -> (i32, i32) {
    %c0_i32 = arith.constant 0 : i32
    %c0_i32_0 = arith.constant 0 : i32
    %c0_i32_1 = arith.constant 0 : i32
    return %c0_i32, %c0_i32_0 : i32, i32
  }
  func.func @transform_3(%arg0: i32) -> (i32, i32) {
    %c0_i32 = arith.constant 0 : i32
    %c0_i32_0 = arith.constant 0 : i32
    %c0_i32_1 = arith.constant 0 : i32
    return %c0_i32, %c0_i32_0 : i32, i32
  }
  func.func @transform_4(%arg0: i32) -> (i32, i32) {
    %c0_i32 = arith.constant 0 : i32
    %c0_i32_0 = arith.constant 0 : i32
    %c0_i32_1 = arith.constant 0 : i32
    return %c0_i32, %c0_i32_0 : i32, i32
  }
  func.func @transform_5(%arg0: i32) -> (i32, i32) {
    %c0_i32 = arith.constant 0 : i32
    %c0_i32_0 = arith.constant 0 : i32
    return %arg0, %c0_i32 : i32, i32
  }
}

</mosaic_0001>

<llo_original>
// kernel: tile.13
$region0: #{tile.13}
  #allocation0 [shape = 's32[1]{0}', space=sflag, size = 0x4, scoped, tag = 'scoped memory for tile.13']
  %s0 = inlined_call_operand.vmem [shape: f32[32], index: 0, kind: input, shape index: {}]
  %s1 = inlined_call_operand.vmem [shape: f32[4,32], index: 1, kind: output, shape index: {}]
  // Predicated region
  $region2: #{tile.13} parent=0 // pred_check
    _
  $region3: #{tile.13} parent=0 // pred_check_branch
    %3 = sbr.rel (0) target = $region5
  $region4: #{tile.13} parent=0 // pred_region
    _
  $region5: #{tile.13} parent=0 // pred_fallthru
    _
  %v4 = vld [vmem:[%s0] ss:$0 sm:$0xff]
  %5 = vst [vmem:[%s1] sm:$0xf] %v4

// kernel: tile.14
$region0: #{tile.14}
  %s0 = inlined_call_operand.vmem [shape: f32[4,32], index: 0, kind: input, shape index: {}]
  %s1 = inlined_call_operand.vmem [shape: f32[1,128], index: 1, kind: output, shape index: {}]
  $region1: #{tile.14} parent=0
    #allocation0 [shape = 'u8[4096]{0}', space=vmem, size = 0x1000, scoped, tag = 'scoped mem for output reshape']
    #allocation1 [shape = 'u8[4096]{0}', space=vmem, size = 0x1000, scoped, tag = 'scoped mem for input reshape']
    %s3 = sshll.u32 1, 4
    %s4 = ssub.s32 %s3, 1
    %v5 = vld [vmem:[%s0] sm:%s4]
    %6 = vst [vmem:[#allocation1] sm:%s4] %v5
    %v7 = vld [vmem:[#allocation1] sm:$0x1]
    %vm8 = vcmask 261120
    %9 = vst.msk [vmem:[#allocation0] sm:$0x1] %vm8, %v7
    %s10 = scalar_lea.vmem [#allocation1], 3
    %v11 = vld [vmem:[%s10] sm:$0x1]
    %12 = vrot.lane.b32.xlu0 %v11, 96
    %v13 = vpop.permute.xlu0 %12
    %vm14 = vcmask 1048320
    %15 = vst.msk [vmem:[#allocation0] sm:$0x1] %vm14, %v13
    %s16 = scalar_lea.vmem [#allocation1], 2
    %v17 = vld [vmem:[%s16] sm:$0x1]
    %18 = vrot.lane.b32.xlu0 %v17, 64
    %v19 = vpop.permute.xlu0 %18
    %vm20 = vcmask 785920
    %21 = vst.msk [vmem:[#allocation0] sm:$0x1] %vm20, %v19
    %s22 = scalar_lea.vmem [#allocation1], 1
    %v23 = vld [vmem:[%s22] sm:$0x1]
    %24 = vrot.lane.b32.xlu0 %v23, 32
    %v25 = vpop.permute.xlu0 %24
    %vm26 = vcmask 523520
    %27 = vst.msk [vmem:[#allocation0] sm:$0x1] %vm26, %v25
    %s29 = sshll.u32 1, 1
    %s30 = ssub.s32 %s29, 1
    %v32 = vld [vmem:[#allocation0] sm:%s30]
    %s33 = sshll.u32 1, 1
    %s34 = ssub.s32 %s33, 1
    %35 = vst [vmem:[%s1] sm:%s34] %v32

// kernel: tile.18
$region0: #{tile.18}
  #allocation0 [shape = 's32[1]{0}', space=sflag, size = 0x4, scoped, tag = 'scoped memory for tile.18']
  %s0 = inlined_call_operand.vmem [shape: f32[4], index: 0, kind: input, shape index: {}]
  %s1 = inlined_call_operand.vmem [shape: f32[4,4], index: 1, kind: output, shape index: {}]
  // Predicated region
  $region2: #{tile.18} parent=0 // pred_check
    _
  $region3: #{tile.18} parent=0 // pred_check_branch
    %3 = sbr.rel (0) target = $region5
  $region4: #{tile.18} parent=0 // pred_region
    _
  $region5: #{tile.18} parent=0 // pred_fallthru
    _
  %v4 = vld [vmem:[%s0] ss:$0 sm:$0xff]
  %5 = vst [vmem:[%s1] sm:$0xf] %v4

// kernel: tile.19
$region0: #{tile.19}
  %s0 = inlined_call_operand.vmem [shape: f32[4,4], index: 0, kind: input, shape index: {}]
  %s1 = inlined_call_operand.vmem [shape: f32[1,16], index: 1, kind: output, shape index: {}]
  $region1: #{tile.19} parent=0
    #allocation0 [shape = 'u8[4096]{0}', space=vmem, size = 0x1000, scoped, tag = 'scoped mem for output reshape']
    #allocation1 [shape = 'u8[4096]{0}', space=vmem, size = 0x1000, scoped, tag = 'scoped mem for input reshape']
    %s3 = sshll.u32 1, 4
    %s4 = ssub.s32 %s3, 1
    %v5 = vld [vmem:[%s0] sm:%s4]
    %6 = vst [vmem:[#allocation1] sm:%s4] %v5
    %v7 = vld [vmem:[#allocation1] sm:$0x1]
    %vm8 = vcmask 31744
    %9 = vst.msk [vmem:[#allocation0] sm:$0x1] %vm8, %v7
    %s10 = scalar_lea.vmem [#allocation1], 3
    %v11 = vld [vmem:[%s10] sm:$0x1]
    %12 = vrot.lane.b32.xlu0 %v11, 12
    %v13 = vpop.permute.xlu0 %12
    %vm14 = vcmask 130144
    %15 = vst.msk [vmem:[#allocation0] sm:$0x1] %vm14, %v13
    %s16 = scalar_lea.vmem [#allocation1], 2
    %v17 = vld [vmem:[%s16] sm:$0x1]
    %18 = vrot.lane.b32.xlu0 %v17, 8
    %v19 = vpop.permute.xlu0 %18
    %vm20 = vcmask 97344
    %21 = vst.msk [vmem:[#allocation0] sm:$0x1] %vm20, %v19
    %s22 = scalar_lea.vmem [#allocation1], 1
    %v23 = vld [vmem:[%s22] sm:$0x1]
    %24 = vrot.lane.b32.xlu0 %v23, 4
    %v25 = vpop.permute.xlu0 %24
    %vm26 = vcmask 64544
    %27 = vst.msk [vmem:[#allocation0] sm:$0x1] %vm26, %v25
    %s29 = sshll.u32 1, 1
    %s30 = ssub.s32 %s29, 1
    %v32 = vld [vmem:[#allocation0] sm:%s30]
    %s33 = sshll.u32 1, 1
    %s34 = ssub.s32 %s33, 1
    %35 = vst [vmem:[%s1] sm:%s34] %v32

// kernel: decoder_block_forward.1
$region0: #{decoder_block_forward.1}
  #allocation0 [shape = 'u32[]', space=smem, size = 0x4, offset = 0x4, fixed_abs, tag = 'smem constant byte address 0x4 - core index']
  #allocation1 [shape = 'u32[144,128]{1,0:T(1,128)}', space=vmem, size = 0x12000, scoped, tag = 'internal scratch']
  %s0 = inlined_call_operand.vmem [shape: f32[8,256], index: 0, kind: input, shape index: {}]
  %s1 = inlined_call_operand.vmem [shape: f32[256,128], index: 1, kind: input, shape index: {}]
  %s2 = inlined_call_operand.vmem [shape: f32[1,128], index: 2, kind: input, shape index: {}]
  %s3 = inlined_call_operand.vmem [shape: f32[128,16], index: 3, kind: input, shape index: {}]
  %s4 = inlined_call_operand.vmem [shape: f32[1,16], index: 4, kind: input, shape index: {}]
  %s5 = inlined_call_operand.vmem [shape: f32[8,16], index: 5, kind: output, shape index: {}]
  %s6 = sld [smem:[#allocation0]]
  $region30: #{decoder_block_forward.1} parent=0
    _
  %s8 = ssub.s32 1, %s6
  %s9 = scalar_select 0, %s8, %s6
  // Predicated region
  $region2: #{decoder_block_forward.1} parent=0 // pred_check
    _
  $region3: #{decoder_block_forward.1} parent=0 // pred_check_branch
    %11 = sbr.rel (0) target = $region5
  $region4: #{decoder_block_forward.1} parent=0 // pred_region
    _
  $region5: #{decoder_block_forward.1} parent=0 // pred_fallthru
    _
  // Predicated region
  $region6: #{decoder_block_forward.1} parent=0 // pred_check
    _
  $region7: #{decoder_block_forward.1} parent=0 // pred_check_branch
    %13 = sbr.rel (0) target = $region9
  $region8: #{decoder_block_forward.1} parent=0 // pred_region
    _
  $region9: #{decoder_block_forward.1} parent=0 // pred_fallthru
    _
  // Predicated region
  $region10: #{decoder_block_forward.1} parent=0 // pred_check
    _
  $region11: #{decoder_block_forward.1} parent=0 // pred_check_branch
    %15 = sbr.rel (0) target = $region13
  $region12: #{decoder_block_forward.1} parent=0 // pred_region
    _
  $region13: #{decoder_block_forward.1} parent=0 // pred_fallthru
    _
  // Predicated region
  $region14: #{decoder_block_forward.1} parent=0 // pred_check
    _
  $region15: #{decoder_block_forward.1} parent=0 // pred_check_branch
    %17 = sbr.rel (0) target = $region17
  $region16: #{decoder_block_forward.1} parent=0 // pred_region
    _
  $region17: #{decoder_block_forward.1} parent=0 // pred_fallthru
    _
  // Predicated region
  $region18: #{decoder_block_forward.1} parent=0 // pred_check
    _
  $region19: #{decoder_block_forward.1} parent=0 // pred_check_branch
    %19 = sbr.rel (0) target = $region21
  $region20: #{decoder_block_forward.1} parent=0 // pred_region
    _
  $region21: #{decoder_block_forward.1} parent=0 // pred_fallthru
    _
  %v20 = vld [vmem:[%s0] sm:$0xff]
  %v21 = vld [vmem:[%s0 + $0x8] sm:$0xff]
  %v22 = vld [vmem:[%s1] sm:$0xff]
  %v23 = vld [vmem:[%s1 + $0x8] sm:$0xff]
  %v24 = vld [vmem:[%s1 + $0x10] sm:$0xff]
  %v25 = vld [vmem:[%s1 + $0x18] sm:$0xff]
  %v26 = vld [vmem:[%s1 + $0x20] sm:$0xff]
  %v27 = vld [vmem:[%s1 + $0x28] sm:$0xff]
  %v28 = vld [vmem:[%s1 + $0x30] sm:$0xff]
  %v29 = vld [vmem:[%s1 + $0x38] sm:$0xff]
  %v30 = vld [vmem:[%s1 + $0x40] sm:$0xff]
  %v31 = vld [vmem:[%s1 + $0x48] sm:$0xff]
  %v32 = vld [vmem:[%s1 + $0x50] sm:$0xff]
  %v33 = vld [vmem:[%s1 + $0x58] sm:$0xff]
  %v34 = vld [vmem:[%s1 + $0x60] sm:$0xff]
  %v35 = vld [vmem:[%s1 + $0x68] sm:$0xff]
  %v36 = vld [vmem:[%s1 + $0x70] sm:$0xff]
  %v37 = vld [vmem:[%s1 + $0x78] sm:$0xff]
  %v38 = vld [vmem:[%s1 + $0x80] sm:$0xff]
  %v39 = vld [vmem:[%s1 + $0x88] sm:$0xff]
  %v40 = vld [vmem:[%s1 + $0x90] sm:$0xff]
  %v41 = vld [vmem:[%s1 + $0x98] sm:$0xff]
  %v42 = vld [vmem:[%s1 + $0xa0] sm:$0xff]
  %v43 = vld [vmem:[%s1 + $0xa8] sm:$0xff]
  %v44 = vld [vmem:[%s1 + $0xb0] sm:$0xff]
  %v45 = vld [vmem:[%s1 + $0xb8] sm:$0xff]
  %v46 = vld [vmem:[%s1 + $0xc0] sm:$0xff]
  %v47 = vld [vmem:[%s1 + $0xc8] sm:$0xff]
  %v48 = vld [vmem:[%s1 + $0xd0] sm:$0xff]
  %v49 = vld [vmem:[%s1 + $0xd8] sm:$0xff]
  %v50 = vld [vmem:[%s1 + $0xe0] sm:$0xff]
  %v51 = vld [vmem:[%s1 + $0xe8] sm:$0xff]
  %v52 = vld [vmem:[%s1 + $0xf0] sm:$0xff]
  %v53 = vld [vmem:[%s1 + $0xf8] sm:$0xff]
  %v54 = vld [vmem:[%s2] sm:$0x1]
  %v56 = vlaneseq
  %v57 = vshrl.u32 %v56, 7
  %v58 = vsub.s32 0, %v57
  %v59 = vrot.slane %v54, %v58
  %61 = vmatprep.subr.mxu0 0.0
  %62 = vmatpush1.msra.mxu0 %v37
  %63 = vmatprep.subr.mxu0 0.0
  %64 = vmatpush1.msra.mxu0 %v36
  %65 = vmatprep.subr.mxu0 0.0
  %66 = vmatpush1.msra.mxu0 %v35
  %67 = vmatprep.subr.mxu0 0.0
  %68 = vmatpush1.msra.mxu0 %v34
  %69 = vmatprep.subr.mxu0 0.0
  %70 = vmatpush1.msra.mxu0 %v33
  %71 = vmatprep.subr.mxu0 0.0
  %72 = vmatpush1.msra.mxu0 %v32
  %73 = vmatprep.subr.mxu0 0.0
  %74 = vmatpush1.msra.mxu0 %v31
  %75 = vmatprep.subr.mxu0 0.0
  %76 = vmatpush1.msra.mxu0 %v30
  %77 = vmatprep.subr.mxu0 0.0
  %78 = vmatpush1.msra.mxu0 %v29
  %79 = vmatprep.subr.mxu0 0.0
  %80 = vmatpush1.msra.mxu0 %v28
  %81 = vmatprep.subr.mxu0 0.0
  %82 = vmatpush1.msra.mxu0 %v27
  %83 = vmatprep.subr.mxu0 0.0
  %84 = vmatpush1.msra.mxu0 %v26
  %85 = vmatprep.subr.mxu0 0.0
  %86 = vmatpush1.msra.mxu0 %v25
  %87 = vmatprep.subr.mxu0 0.0
  %88 = vmatpush1.msra.mxu0 %v24
  %89 = vmatprep.subr.mxu0 0.0
  %90 = vmatpush1.msra.mxu0 %v23
  %91 = vmatprep.subr.mxu0 0.0
  %92 = vmatpush1.msra.mxu0 %v22
  %93 = vmatprep.subr.mxu0 0.0
  %94 = vmatpush2.msra.mxu0 %v53
  %95 = vmatprep.subr.mxu0 0.0
  %96 = vmatpush2.msra.mxu0 %v52
  %97 = vmatprep.subr.mxu0 0.0
  %98 = vmatpush2.msra.mxu0 %v51
  %99 = vmatprep.subr.mxu0 0.0
  %100 = vmatpush2.msra.mxu0 %v50
  %101 = vmatprep.subr.mxu0 0.0
  %102 = vmatpush2.msra.mxu0 %v49
  %103 = vmatprep.subr.mxu0 0.0
  %104 = vmatpush2.msra.mxu0 %v48
  %105 = vmatprep.subr.mxu0 0.0
  %106 = vmatpush2.msra.mxu0 %v47
  %107 = vmatprep.subr.mxu0 0.0
  %108 = vmatpush2.msra.mxu0 %v46
  %109 = vmatprep.subr.mxu0 0.0
  %110 = vmatpush2.msra.mxu0 %v45
  %111 = vmatprep.subr.mxu0 0.0
  %112 = vmatpush2.msra.mxu0 %v44
  %113 = vmatprep.subr.mxu0 0.0
  %114 = vmatpush2.msra.mxu0 %v43
  %115 = vmatprep.subr.mxu0 0.0
  %116 = vmatpush2.msra.mxu0 %v42
  %117 = vmatprep.subr.mxu0 0.0
  %118 = vmatpush2.msra.mxu0 %v41
  %119 = vmatprep.subr.mxu0 0.0
  %120 = vmatpush2.msra.mxu0 %v40
  %121 = vmatprep.subr.mxu0 0.0
  %122 = vmatpush2.msra.mxu0 %v39
  %123 = vmatprep.subr.mxu0 0.0
  %124 = vmatpush2.msra.mxu0 %v38
  %125 = vmatprep.mubr.f32.mxu0 %v21
  %126 = vmatmul.mubr.f32.gmra.mxu0 %v20
  %v127 = vpop.f32.mrf.mxu0
  %v128 = vadd.f32 %v59, %v127
  %v129 = vpop.f32.mrf.mxu0
  %130 = vdwg.mxu0
  %v131 = vmax.f32 %v128, 0.0
  %v132 = vld [vmem:[%s3] sm:$0xff]
  %v133 = vld [vmem:[%s3 + $0x8] sm:$0xff]
  %v134 = vld [vmem:[%s3 + $0x10] sm:$0xff]
  %v135 = vld [vmem:[%s3 + $0x18] sm:$0xff]
  %v136 = vld [vmem:[%s3 + $0x20] sm:$0xff]
  %v137 = vld [vmem:[%s3 + $0x28] sm:$0xff]
  %v138 = vld [vmem:[%s3 + $0x30] sm:$0xff]
  %v139 = vld [vmem:[%s3 + $0x38] sm:$0xff]
  %v140 = vld [vmem:[%s3 + $0x40] sm:$0xff]
  %v141 = vld [vmem:[%s3 + $0x48] sm:$0xff]
  %v142 = vld [vmem:[%s3 + $0x50] sm:$0xff]
  %v143 = vld [vmem:[%s3 + $0x58] sm:$0xff]
  %v144 = vld [vmem:[%s3 + $0x60] sm:$0xff]
  %v145 = vld [vmem:[%s3 + $0x68] sm:$0xff]
  %v146 = vld [vmem:[%s3 + $0x70] sm:$0xff]
  %v147 = vld [vmem:[%s3 + $0x78] sm:$0xff]
  %v148 = vld [vmem:[%s4] sm:$0x1]
  %v150 = vlaneseq
  %v151 = vshrl.u32 %v150, 7
  %v152 = vsub.s32 0, %v151
  %v153 = vrot.slane %v148, %v152
  %155 = vmatprep.subr.mxu0 0.0
  %156 = vmatpush1.msra.mxu0 %v147
  %157 = vmatprep.subr.mxu0 0.0
  %158 = vmatpush1.msra.mxu0 %v146
  %159 = vmatprep.subr.mxu0 0.0
  %160 = vmatpush1.msra.mxu0 %v145
  %161 = vmatprep.subr.mxu0 0.0
  %162 = vmatpush1.msra.mxu0 %v144
  %163 = vmatprep.subr.mxu0 0.0
  %164 = vmatpush1.msra.mxu0 %v143
  %165 = vmatprep.subr.mxu0 0.0
  %166 = vmatpush1.msra.mxu0 %v142
  %167 = vmatprep.subr.mxu0 0.0
  %168 = vmatpush1.msra.mxu0 %v141
  %169 = vmatprep.subr.mxu0 0.0
  %170 = vmatpush1.msra.mxu0 %v140
  %171 = vmatprep.subr.mxu0 0.0
  %172 = vmatpush1.msra.mxu0 %v139
  %173 = vmatprep.subr.mxu0 0.0
  %174 = vmatpush1.msra.mxu0 %v138
  %175 = vmatprep.subr.mxu0 0.0
  %176 = vmatpush1.msra.mxu0 %v137
  %177 = vmatprep.subr.mxu0 0.0
  %178 = vmatpush1.msra.mxu0 %v136
  %179 = vmatprep.subr.mxu0 0.0
  %180 = vmatpush1.msra.mxu0 %v135
  %181 = vmatprep.subr.mxu0 0.0
  %182 = vmatpush1.msra.mxu0 %v134
  %183 = vmatprep.subr.mxu0 0.0
  %184 = vmatpush1.msra.mxu0 %v133
  %185 = vmatprep.subr.mxu0 0.0
  %186 = vmatpush1.msra.mxu0 %v132
  %187 = vmatprep.subr.mxu0 0.0
  %188 = vmatpush2.msra.mxu0 0.0
  %189 = vmatprep.subr.mxu0 0.0
  %190 = vmatpush2.msra.mxu0 0.0
  %191 = vmatprep.subr.mxu0 0.0
  %192 = vmatpush2.msra.mxu0 0.0
  %193 = vmatprep.subr.mxu0 0.0
  %194 = vmatpush2.msra.mxu0 0.0
  %195 = vmatprep.subr.mxu0 0.0
  %196 = vmatpush2.msra.mxu0 0.0
  %197 = vmatprep.subr.mxu0 0.0
  %198 = vmatpush2.msra.mxu0 0.0
  %199 = vmatprep.subr.mxu0 0.0
  %200 = vmatpush2.msra.mxu0 0.0
  %201 = vmatprep.subr.mxu0 0.0
  %202 = vmatpush2.msra.mxu0 0.0
  %203 = vmatprep.subr.mxu0 0.0
  %204 = vmatpush2.msra.mxu0 0.0
  %205 = vmatprep.subr.mxu0 0.0
  %206 = vmatpush2.msra.mxu0 0.0
  %207 = vmatprep.subr.mxu0 0.0
  %208 = vmatpush2.msra.mxu0 0.0
  %209 = vmatprep.subr.mxu0 0.0
  %210 = vmatpush2.msra.mxu0 0.0
  %211 = vmatprep.subr.mxu0 0.0
  %212 = vmatpush2.msra.mxu0 0.0
  %213 = vmatprep.subr.mxu0 0.0
  %214 = vmatpush2.msra.mxu0 0.0
  %215 = vmatprep.subr.mxu0 0.0
  %216 = vmatpush2.msra.mxu0 0.0
  %217 = vmatprep.subr.mxu0 0.0
  %218 = vmatpush2.msra.mxu0 0.0
  %219 = vmatprep.mubr.f32.mxu0 0.0
  %220 = vmatmul.mubr.f32.gmra.mxu0 %v131
  %v221 = vpop.f32.mrf.mxu0
  %v222 = vadd.f32 %v153, %v221
  %v223 = vpop.f32.mrf.mxu0
  %224 = vdwg.mxu0
  %v225 = vmax.f32 %v222, 0.0
  %vm226 = vcmask 130048
  %227 = vst.msk [vmem:[%s5] sm:$0xff] %vm226, %v225
  // Predicated region
  $region22: #{decoder_block_forward.1} parent=0 // pred_check
    _
  $region23: #{decoder_block_forward.1} parent=0 // pred_check_branch
    %229 = sbr.rel (0) target = $region25
  $region24: #{decoder_block_forward.1} parent=0 // pred_region
    _
  $region25: #{decoder_block_forward.1} parent=0 // pred_fallthru
    _
  // Predicated region
  $region26: #{decoder_block_forward.1} parent=0 // pred_check
    _
  $region27: #{decoder_block_forward.1} parent=0 // pred_check_branch
    %231 = sbr.rel (0) target = $region29
  $region28: #{decoder_block_forward.1} parent=0 // pred_region
    _
  $region29: #{decoder_block_forward.1} parent=0 // pred_fallthru
    _

</llo_original>
